<compile_context>
chip_gen: v6e
topology: v6e:2x2x1
jax: 0.10.0
libtpu: 0.0.40
codegen_flags: <defaults>
</compile_context>

<pallas_src>
import functools

import jax
import jax.numpy as jnp
from jax.experimental import pallas as pl
from jax.experimental.pallas import tpu as pltpu


def _round_up(x, m):
    return ((x + m - 1) // m) * m


def duelling_q_kernel(x_ref,
                      w1_ref, b1_ref,
                      w2_ref, b2_ref,
                      w3_ref, b3_ref,
                      out_ref,
                      *, num_actions):
    """One batch tile: 3 fused matmuls + ReLUs.

    out_ref[:, :A]   = val + adv          (partial q, global mean not yet removed)
    out_ref[:,  A ]  = per-row sum of adv (for the global-mean finalize)
    """
    mxu_dtype = w1_ref.dtype  # f32 by default, bf16 if weights were cast

    x = x_ref[...]

    # fc1 + relu
    h = jnp.dot(x.astype(mxu_dtype), w1_ref[...],
                preferred_element_type=jnp.float32) + b1_ref[...]
    h = jnp.maximum(h, 0.0)

    # fused fc2_advantage | fc2_value + relu   -> hv = [a_h | v_h], shape [tb, 128]
    hv = jnp.dot(h.astype(mxu_dtype), w2_ref[...],
                 preferred_element_type=jnp.float32) + b2_ref[...]
    hv = jnp.maximum(hv, 0.0)

    # fused fc3 (block-diagonal weight)        -> o3 = [adv | val], shape [tb, A+1]
    o3 = jnp.dot(hv.astype(mxu_dtype), w3_ref[...],
                 preferred_element_type=jnp.float32) + b3_ref[...]

    adv = o3[:, :num_actions]
    val = o3[:, num_actions:num_actions + 1]

    # Single full-width store of the tile (avoids masked partial column stores).
    out_ref[...] = jnp.concatenate(
        [val + adv, jnp.sum(adv, axis=1, keepdims=True)], axis=1)


def fuse_params(params, weight_dtype=jnp.float32):
    """Concatenate branch weights into lane-filling fused weights.

    w2_cat : [F1, 2*F2]   = [W2a | W2v]
    w3_cat : [2*F2, A+1]  block-diagonal: [:F2,:A]=W3a, [F2:,A:]=W3v
    Biases stay float32 (elementwise path).
    """
    F2 = params["w2a"].shape[1]
    A = params["w3a"].shape[1]

    w2_cat = jnp.concatenate([params["w2a"], params["w2v"]], axis=1)
    b2_cat = jnp.concatenate([params["b2a"], params["b2v"]], axis=1)

    w3_cat = jnp.zeros((2 * F2, A + 1), jnp.float32)
    w3_cat = w3_cat.at[:F2, :A].set(params["w3a"])
    w3_cat = w3_cat.at[F2:, A:].set(params["w3v"])
    b3_cat = jnp.concatenate([params["b3a"], params["b3v"]], axis=1)

    return dict(
        w1=params["w1"].astype(weight_dtype),
        b1=params["b1"].astype(jnp.float32),
        w2=w2_cat.astype(weight_dtype),
        b2=b2_cat.astype(jnp.float32),
        w3=w3_cat.astype(weight_dtype),
        b3=b3_cat.astype(jnp.float32),
    )


def duelling_q_forward(state, params, *, weight_dtype=jnp.float32, tile_b=None):
    """state: [B, S] float32.  params: dict of raw (unfused) weights/biases."""
    B, S = state.shape
    F1 = params["w1"].shape[1]
    F2 = params["w2a"].shape[1]
    A = params["w3a"].shape[1]

    fp = fuse_params(params, weight_dtype)

    # Batch tiling: tiles of up to 512 rows (multiple of the 8-row sublane and
    # the 256-row MXU M dim on v6e/v7x; amortizes per-step grid overhead).
    # Weights stay resident in VMEM; padded rows are sliced off in the wrapper.
    if tile_b is None:
        tile_b = min(512, _round_up(B, 8))
    b_pad = _round_up(B, tile_b)
    if b_pad != B:
        state = jnp.pad(state, ((0, b_pad - B), (0, 0)))
    grid = (b_pad // tile_b,)

    out = pl.pallas_call(
        functools.partial(duelling_q_kernel, num_actions=A),
        out_shape=jax.ShapeDtypeStruct((b_pad, A + 1), jnp.float32),
        grid=grid,
        in_specs=[
            pl.BlockSpec((tile_b, S), lambda i: (i, 0)),       # x: streams per tile
            pl.BlockSpec((S, F1), lambda i: (0, 0)),           # weights: resident
            pl.BlockSpec((1, F1), lambda i: (0, 0)),
            pl.BlockSpec((F1, 2 * F2), lambda i: (0, 0)),
            pl.BlockSpec((1, 2 * F2), lambda i: (0, 0)),
            pl.BlockSpec((2 * F2, A + 1), lambda i: (0, 0)),
            pl.BlockSpec((1, A + 1), lambda i: (0, 0)),
        ],
        out_specs=pl.BlockSpec((tile_b, A + 1), lambda i: (i, 0)),
        compiler_params=pltpu.CompilerParams(
            dimension_semantics=("parallel",)),
    )(state, fp["w1"], fp["b1"], fp["w2"], fp["b2"], fp["w3"], fp["b3"])

    # Finalize the GLOBAL advantage mean outside the tile loop so batch tiles
    # stay independent (keeps the grid axis parallel / megacore-shardable).
    q_partial = out[:B, :A]                 # val + adv
    adv_total = jnp.sum(out[:B, A])         # sum of per-row adv sums
    return q_partial - adv_total * (1.0 / (B * A))


def init_params(key, state_size, action_size, fc1_units=64, fc2_units=64):
    """nn.Linear-style init: U(-1/sqrt(fan_in), +1/sqrt(fan_in)); weights [in, out]."""
    def linear(k, fan_in, fan_out):
        kw, kb = jax.random.split(k)
        bound = 1.0 / jnp.sqrt(fan_in)
        w = jax.random.uniform(kw, (fan_in, fan_out), jnp.float32, -bound, bound)
        b = jax.random.uniform(kb, (1, fan_out), jnp.float32, -bound, bound)
        return w, b

    keys = jax.random.split(key, 5)
    w1, b1 = linear(keys[0], state_size, fc1_units)
    w2a, b2a = linear(keys[1], fc1_units, fc2_units)
    w2v, b2v = linear(keys[2], fc1_units, fc2_units)
    w3a, b3a = linear(keys[3], fc2_units, action_size)
    w3v, b3v = linear(keys[4], fc2_units, 1)
    return dict(w1=w1, b1=b1, w2a=w2a, b2a=b2a, w2v=w2v, b2v=b2v,
                w3a=w3a, b3a=b3a, w3v=w3v, b3v=b3v)


def duelling_q_ref(state, p):
    """Pure-JAX reference (unfused), matching the PyTorch module semantics."""
    h = jnp.maximum(state @ p["w1"] + p["b1"], 0.0)
    a_h = jnp.maximum(h @ p["w2a"] + p["b2a"], 0.0)
    v_h = jnp.maximum(h @ p["w2v"] + p["b2v"], 0.0)
    adv = a_h @ p["w3a"] + p["b3a"]
    val = v_h @ p["w3v"] + p["b3v"]
    return val + adv - jnp.mean(adv)


if __name__ == "__main__":
    key = jax.random.PRNGKey(0)
    k_params, k_state = jax.random.split(key)

    batch = 2
    state_size = 8
    action_size = 4
    fc1_units = 64
    fc2_units = 64

    params = init_params(k_params, state_size, action_size, fc1_units, fc2_units)
    state = jax.random.normal(k_state, (batch, state_size), jnp.float32)

    q = duelling_q_forward(state, params)
    q = jax.block_until_ready(q)

    q_expected = duelling_q_ref(state, params)
    assert q.shape == (batch, action_size)
    assert jnp.allclose(q, q_expected, atol=1e-5, rtol=1e-5), (
        f"max abs err = {jnp.max(jnp.abs(q - q_expected))}")

    print("KERNEL_OK")
</pallas_src>

<mosaic_0001>
module attributes {stable_mosaic.version = 11 : i64} {
  func.func @duelling_q_kernel(%arg0: i32, %arg1: memref<8x8xf32, #tpu.memory_space<vmem>>, %arg2: memref<8x64xf32, #tpu.memory_space<vmem>>, %arg3: memref<1x64xf32, #tpu.memory_space<vmem>>, %arg4: memref<64x128xf32, #tpu.memory_space<vmem>>, %arg5: memref<1x128xf32, #tpu.memory_space<vmem>>, %arg6: memref<128x5xf32, #tpu.memory_space<vmem>>, %arg7: memref<1x5xf32, #tpu.memory_space<vmem>>, %arg8: memref<8x5xf32, #tpu.memory_space<vmem>>) attributes {dimension_semantics = [#tpu.dimension_semantics<parallel>], iteration_bounds = array<i64: 1>, scalar_prefetch = 0 : i64, scratch_operands = 0 : i64, tpu.core_type = #tpu.core_type<tc>, window_params = [{transform_indices = @transform_0, window_bounds = array<i64: 8, 8>}, {pipeline_mode = #tpu.pipeline_mode<synchronous>, transform_indices = @transform_1, window_bounds = array<i64: 8, 64>}, {pipeline_mode = #tpu.pipeline_mode<synchronous>, transform_indices = @transform_2, window_bounds = array<i64: 1, 64>}, {pipeline_mode = #tpu.pipeline_mode<synchronous>, transform_indices = @transform_3, window_bounds = array<i64: 64, 128>}, {pipeline_mode = #tpu.pipeline_mode<synchronous>, transform_indices = @transform_4, window_bounds = array<i64: 1, 128>}, {pipeline_mode = #tpu.pipeline_mode<synchronous>, transform_indices = @transform_5, window_bounds = array<i64: 128, 5>}, {pipeline_mode = #tpu.pipeline_mode<synchronous>, transform_indices = @transform_6, window_bounds = array<i64: 1, 5>}, {transform_indices = @transform_7, window_bounds = array<i64: 8, 5>}]} {
    %c0 = arith.constant 0 : index
    %c0_0 = arith.constant 0 : index
    %0 = vector.load %arg1[%c0, %c0_0] : memref<8x8xf32, #tpu.memory_space<vmem>>, vector<8x8xf32>
    %c0_1 = arith.constant 0 : index
    %c0_2 = arith.constant 0 : index
    %1 = vector.load %arg2[%c0_1, %c0_2] : memref<8x64xf32, #tpu.memory_space<vmem>>, vector<8x64xf32>
    %cst = arith.constant dense<0.000000e+00> : vector<8x64xf32>
    %2 = tpu.matmul %0, %1, %cst {dimension_numbers = #tpu.dot_dimension_numbers<[1], [0], [0], [1], [0, 0, 1, 1], [], []>} : vector<8x8xf32>, vector<8x64xf32>, vector<8x64xf32> -> vector<8x64xf32>
    %c0_3 = arith.constant 0 : index
    %c0_4 = arith.constant 0 : index
    %3 = vector.load %arg3[%c0_3, %c0_4] : memref<1x64xf32, #tpu.memory_space<vmem>>, vector<1x64xf32>
    %4 = vector.broadcast %3 : vector<1x64xf32> to vector<8x64xf32>
    %5 = arith.addf %2, %4 : vector<8x64xf32>
    %cst_5 = arith.constant 0.000000e+00 : f32
    %6 = vector.broadcast %cst_5 : f32 to vector<8x64xf32>
    %7 = arith.maximumf %5, %6 : vector<8x64xf32>
    %c0_6 = arith.constant 0 : index
    %c0_7 = arith.constant 0 : index
    %8 = vector.load %arg4[%c0_6, %c0_7] : memref<64x128xf32, #tpu.memory_space<vmem>>, vector<64x128xf32>
    %cst_8 = arith.constant dense<0.000000e+00> : vector<8x128xf32>
    %9 = tpu.matmul %7, %8, %cst_8 {dimension_numbers = #tpu.dot_dimension_numbers<[1], [0], [0], [1], [0, 0, 1, 1], [], []>} : vector<8x64xf32>, vector<64x128xf32>, vector<8x128xf32> -> vector<8x128xf32>
    %c0_9 = arith.constant 0 : index
    %c0_10 = arith.constant 0 : index
    %10 = vector.load %arg5[%c0_9, %c0_10] : memref<1x128xf32, #tpu.memory_space<vmem>>, vector<1x128xf32>
    %11 = vector.broadcast %10 : vector<1x128xf32> to vector<8x128xf32>
    %12 = arith.addf %9, %11 : vector<8x128xf32>
    %cst_11 = arith.constant 0.000000e+00 : f32
    %13 = vector.broadcast %cst_11 : f32 to vector<8x128xf32>
    %14 = arith.maximumf %12, %13 : vector<8x128xf32>
    %c0_12 = arith.constant 0 : index
    %c0_13 = arith.constant 0 : index
    %15 = vector.load %arg6[%c0_12, %c0_13] : memref<128x5xf32, #tpu.memory_space<vmem>>, vector<128x5xf32>
    %cst_14 = arith.constant dense<0.000000e+00> : vector<8x5xf32>
    %16 = tpu.matmul %14, %15, %cst_14 {dimension_numbers = #tpu.dot_dimension_numbers<[1], [0], [0], [1], [0, 0, 1, 1], [], []>} : vector<8x128xf32>, vector<128x5xf32>, vector<8x5xf32> -> vector<8x5xf32>
    %c0_15 = arith.constant 0 : index
    %c0_16 = arith.constant 0 : index
    %17 = vector.load %arg7[%c0_15, %c0_16] : memref<1x5xf32, #tpu.memory_space<vmem>>, vector<1x5xf32>
    %18 = vector.broadcast %17 : vector<1x5xf32> to vector<8x5xf32>
    %19 = arith.addf %16, %18 : vector<8x5xf32>
    %20 = vector.extract_strided_slice %19 {offsets = [0, 0], sizes = [8, 4], strides = [1, 1]} : vector<8x5xf32> to vector<8x4xf32>
    %21 = vector.extract_strided_slice %19 {offsets = [0, 4], sizes = [8, 1], strides = [1, 1]} : vector<8x5xf32> to vector<8x1xf32>
    %22 = vector.broadcast %21 : vector<8x1xf32> to vector<8x4xf32>
    %23 = arith.addf %22, %20 : vector<8x4xf32>
    %cst_17 = arith.constant dense<0.000000e+00> : vector<8xf32>
    %24 = vector.multi_reduction <add>, %20, %cst_17 [1] : vector<8x4xf32> to vector<8xf32>
    %25 = vector.shape_cast %24 : vector<8xf32> to vector<8x1xf32>
    %26 = tpu.concatenate %23, %25 in 1 : vector<8x4xf32>, vector<8x1xf32> -> vector<8x5xf32>
    %c0_18 = arith.constant 0 : index
    %c0_19 = arith.constant 0 : index
    %27 = vector.load %arg8[%c0_18, %c0_19] : memref<8x5xf32, #tpu.memory_space<vmem>>, vector<8x5xf32>
    tpu.vector_store %arg8[%c0_18, %c0_19], %26 {strides = array<i32>} : memref<8x5xf32, #tpu.memory_space<vmem>>, vector<8x5xf32>,
    return
  }
  func.func @transform_0(%arg0: i32) -> (i32, i32) {
    %c0_i32 = arith.constant 0 : i32
    %c0_i32_0 = arith.constant 0 : i32
    return %arg0, %c0_i32 : i32, i32
  }
  func.func @transform_1(%arg0: i32) -> (i32, i32) {
    %c0_i32 = arith.constant 0 : i32
    %c0_i32_0 = arith.constant 0 : i32
    %c0_i32_1 = arith.constant 0 : i32
    return %c0_i32, %c0_i32_0 : i32, i32
  }
  func.func @transform_2(%arg0: i32) -> (i32, i32) {
    %c0_i32 = arith.constant 0 : i32
    %c0_i32_0 = arith.constant 0 : i32
    %c0_i32_1 = arith.constant 0 : i32
    return %c0_i32, %c0_i32_0 : i32, i32
  }
  func.func @transform_3(%arg0: i32) -> (i32, i32) {
    %c0_i32 = arith.constant 0 : i32
    %c0_i32_0 = arith.constant 0 : i32
    %c0_i32_1 = arith.constant 0 : i32
    return %c0_i32, %c0_i32_0 : i32, i32
  }
  func.func @transform_4(%arg0: i32) -> (i32, i32) {
    %c0_i32 = arith.constant 0 : i32
    %c0_i32_0 = arith.constant 0 : i32
    %c0_i32_1 = arith.constant 0 : i32
    return %c0_i32, %c0_i32_0 : i32, i32
  }
  func.func @transform_5(%arg0: i32) -> (i32, i32) {
    %c0_i32 = arith.constant 0 : i32
    %c0_i32_0 = arith.constant 0 : i32
    %c0_i32_1 = arith.constant 0 : i32
    return %c0_i32, %c0_i32_0 : i32, i32
  }
  func.func @transform_6(%arg0: i32) -> (i32, i32) {
    %c0_i32 = arith.constant 0 : i32
    %c0_i32_0 = arith.constant 0 : i32
    %c0_i32_1 = arith.constant 0 : i32
    return %c0_i32, %c0_i32_0 : i32, i32
  }
  func.func @transform_7(%arg0: i32) -> (i32, i32) {
    %c0_i32 = arith.constant 0 : i32
    %c0_i32_0 = arith.constant 0 : i32
    return %arg0, %c0_i32 : i32, i32
  }
}

</mosaic_0001>

<llo_original>
// kernel: tpu_custom_call.1
$region0: #{tpu_custom_call.1}
  #allocation0 [shape = 'u32[]', space=smem, size = 0x4, offset = 0x4, fixed_abs, tag = 'smem constant byte address 0x4 - core index']
  #allocation1 [shape = 'u32[144,128]{1,0:T(1,128)}', space=vmem, size = 0x12000, scoped, tag = 'internal scratch']
  %s0 = inlined_call_operand.vmem [shape: f32[8,8], index: 0, kind: input, shape index: {}]
  %s1 = inlined_call_operand.vmem [shape: f32[8,64], index: 1, kind: input, shape index: {}]
  %s2 = inlined_call_operand.vmem [shape: f32[1,64], index: 2, kind: input, shape index: {}]
  %s3 = inlined_call_operand.vmem [shape: f32[64,128], index: 3, kind: input, shape index: {}]
  %s4 = inlined_call_operand.vmem [shape: f32[1,128], index: 4, kind: input, shape index: {}]
  %s5 = inlined_call_operand.vmem [shape: f32[128,5], index: 5, kind: input, shape index: {}]
  %s6 = inlined_call_operand.vmem [shape: f32[1,5], index: 6, kind: input, shape index: {}]
  %s7 = inlined_call_operand.hbm [shape: f32[8,5], index: 7, kind: output, shape index: {}]
  %s8 = sld [smem:[#allocation0]]
  $region38: #{tpu_custom_call.1} parent=0
    _
  %s10 = ssub.s32 1, %s8
  %s11 = scalar_select 0, %s10, %s8
  $region1: #{tpu_custom_call.1} parent=0
    #allocation2 [shape = 'u8[4096]{0}', space=vmem, size = 0x1000, scoped, tag = 'output window, operand 0, single buffered']
    #allocation3 [shape = 's32[1]{0}', space=sflag, size = 0x4, scoped, tag = 'scoped memory for tpu_custom_call.1']
    %12 = vsyncpa [#allocation3], 0
    // Predicated region
    $region2: #{tpu_custom_call.1} parent=1 // pred_check
      _
    $region3: #{tpu_custom_call.1} parent=1 // pred_check_branch
      %14 = sbr.rel (0) target = $region5
    $region4: #{tpu_custom_call.1} parent=1 // pred_region
      _
    $region5: #{tpu_custom_call.1} parent=1 // pred_fallthru
      _
    // Predicated region
    $region6: #{tpu_custom_call.1} parent=1 // pred_check
      _
    $region7: #{tpu_custom_call.1} parent=1 // pred_check_branch
      %16 = sbr.rel (0) target = $region9
    $region8: #{tpu_custom_call.1} parent=1 // pred_region
      _
    $region9: #{tpu_custom_call.1} parent=1 // pred_fallthru
      _
    // Predicated region
    $region10: #{tpu_custom_call.1} parent=1 // pred_check
      _
    $region11: #{tpu_custom_call.1} parent=1 // pred_check_branch
      %18 = sbr.rel (0) target = $region13
    $region12: #{tpu_custom_call.1} parent=1 // pred_region
      _
    $region13: #{tpu_custom_call.1} parent=1 // pred_fallthru
      _
    // Predicated region
    $region14: #{tpu_custom_call.1} parent=1 // pred_check
      _
    $region15: #{tpu_custom_call.1} parent=1 // pred_check_branch
      %20 = sbr.rel (0) target = $region17
    $region16: #{tpu_custom_call.1} parent=1 // pred_region
      _
    $region17: #{tpu_custom_call.1} parent=1 // pred_fallthru
      _
    // Predicated region
    $region18: #{tpu_custom_call.1} parent=1 // pred_check
      _
    $region19: #{tpu_custom_call.1} parent=1 // pred_check_branch
      %22 = sbr.rel (0) target = $region21
    $region20: #{tpu_custom_call.1} parent=1 // pred_region
      _
    $region21: #{tpu_custom_call.1} parent=1 // pred_fallthru
      _
    // Predicated region
    $region22: #{tpu_custom_call.1} parent=1 // pred_check
      _
    $region23: #{tpu_custom_call.1} parent=1 // pred_check_branch
      %24 = sbr.rel (0) target = $region25
    $region24: #{tpu_custom_call.1} parent=1 // pred_region
      _
    $region25: #{tpu_custom_call.1} parent=1 // pred_fallthru
      _
    // Predicated region
    $region26: #{tpu_custom_call.1} parent=1 // pred_check
      _
    $region27: #{tpu_custom_call.1} parent=1 // pred_check_branch
      %26 = sbr.rel (0) target = $region29
    $region28: #{tpu_custom_call.1} parent=1 // pred_region
      _
    $region29: #{tpu_custom_call.1} parent=1 // pred_fallthru
      _
    %v27 = vld [vmem:[%s0] sm:$0xff]
    %v28 = vld [vmem:[%s1] sm:$0xff]
    %v29 = vld [vmem:[%s2] sm:$0x1]
    %v31 = vlaneseq
    %v32 = vshrl.u32 %v31, 7
    %v33 = vsub.s32 0, %v32
    %v34 = vrot.slane %v29, %v33
    %vm36 = vcmask 64512
    %v38 = vsel %vm36, %v27, 0
    %40 = vmatprep.subr.mxu0 0.0
    %41 = vmatpush1.msra.mxu0 0.0
    %42 = vmatprep.subr.mxu0 0.0
    %43 = vmatpush1.msra.mxu0 0.0
    %44 = vmatprep.subr.mxu0 0.0
    %45 = vmatpush1.msra.mxu0 0.0
    %46 = vmatprep.subr.mxu0 0.0
    %47 = vmatpush1.msra.mxu0 0.0
    %48 = vmatprep.subr.mxu0 0.0
    %49 = vmatpush1.msra.mxu0 0.0
    %50 = vmatprep.subr.mxu0 0.0
    %51 = vmatpush1.msra.mxu0 0.0
    %52 = vmatprep.subr.mxu0 0.0
    %53 = vmatpush1.msra.mxu0 0.0
    %54 = vmatprep.subr.mxu0 0.0
    %55 = vmatpush1.msra.mxu0 0.0
    %56 = vmatprep.subr.mxu0 0.0
    %57 = vmatpush1.msra.mxu0 0.0
    %58 = vmatprep.subr.mxu0 0.0
    %59 = vmatpush1.msra.mxu0 0.0
    %60 = vmatprep.subr.mxu0 0.0
    %61 = vmatpush1.msra.mxu0 0.0
    %62 = vmatprep.subr.mxu0 0.0
    %63 = vmatpush1.msra.mxu0 0.0
    %64 = vmatprep.subr.mxu0 0.0
    %65 = vmatpush1.msra.mxu0 0.0
    %66 = vmatprep.subr.mxu0 0.0
    %67 = vmatpush1.msra.mxu0 0.0
    %68 = vmatprep.subr.mxu0 0.0
    %69 = vmatpush1.msra.mxu0 0.0
    %70 = vmatprep.subr.mxu0 0.0
    %71 = vmatpush1.msra.mxu0 %v28
    %72 = vmatprep.subr.mxu0 0.0
    %73 = vmatpush2.msra.mxu0 0.0
    %74 = vmatprep.subr.mxu0 0.0
    %75 = vmatpush2.msra.mxu0 0.0
    %76 = vmatprep.subr.mxu0 0.0
    %77 = vmatpush2.msra.mxu0 0.0
    %78 = vmatprep.subr.mxu0 0.0
    %79 = vmatpush2.msra.mxu0 0.0
    %80 = vmatprep.subr.mxu0 0.0
    %81 = vmatpush2.msra.mxu0 0.0
    %82 = vmatprep.subr.mxu0 0.0
    %83 = vmatpush2.msra.mxu0 0.0
    %84 = vmatprep.subr.mxu0 0.0
    %85 = vmatpush2.msra.mxu0 0.0
    %86 = vmatprep.subr.mxu0 0.0
    %87 = vmatpush2.msra.mxu0 0.0
    %88 = vmatprep.subr.mxu0 0.0
    %89 = vmatpush2.msra.mxu0 0.0
    %90 = vmatprep.subr.mxu0 0.0
    %91 = vmatpush2.msra.mxu0 0.0
    %92 = vmatprep.subr.mxu0 0.0
    %93 = vmatpush2.msra.mxu0 0.0
    %94 = vmatprep.subr.mxu0 0.0
    %95 = vmatpush2.msra.mxu0 0.0
    %96 = vmatprep.subr.mxu0 0.0
    %97 = vmatpush2.msra.mxu0 0.0
    %98 = vmatprep.subr.mxu0 0.0
    %99 = vmatpush2.msra.mxu0 0.0
    %100 = vmatprep.subr.mxu0 0.0
    %101 = vmatpush2.msra.mxu0 0.0
    %102 = vmatprep.subr.mxu0 0.0
    %103 = vmatpush2.msra.mxu0 0.0
    %104 = vmatprep.mubr.f32.mxu0 0.0
    %105 = vmatmul.mubr.f32.gmra.mxu0 %v38
    %v106 = vpop.f32.mrf.mxu0
    %v107 = vadd.f32 %v34, %v106
    %v108 = vpop.f32.mrf.mxu0
    %109 = vdwg.mxu0
    %v110 = vmax.f32 %v107, 0.0
    %v111 = vld [vmem:[%s3] sm:$0xff]
    %v112 = vld [vmem:[%s3 + $0x8] sm:$0xff]
    %v113 = vld [vmem:[%s3 + $0x10] sm:$0xff]
    %v114 = vld [vmem:[%s3 + $0x18] sm:$0xff]
    %v115 = vld [vmem:[%s3 + $0x20] sm:$0xff]
    %v116 = vld [vmem:[%s3 + $0x28] sm:$0xff]
    %v117 = vld [vmem:[%s3 + $0x30] sm:$0xff]
    %v118 = vld [vmem:[%s3 + $0x38] sm:$0xff]
    %v119 = vld [vmem:[%s4] sm:$0x1]
    %v121 = vlaneseq
    %v122 = vshrl.u32 %v121, 7
    %v123 = vsub.s32 0, %v122
    %v124 = vrot.slane %v119, %v123
    %vm126 = vcmask 523264
    %v128 = vsel %vm126, %v110, 0
    %130 = vmatprep.subr.mxu0 0.0
    %131 = vmatpush1.msra.mxu0 0.0
    %132 = vmatprep.subr.mxu0 0.0
    %133 = vmatpush1.msra.mxu0 0.0
    %134 = vmatprep.subr.mxu0 0.0
    %135 = vmatpush1.msra.mxu0 0.0
    %136 = vmatprep.subr.mxu0 0.0
    %137 = vmatpush1.msra.mxu0 0.0
    %138 = vmatprep.subr.mxu0 0.0
    %139 = vmatpush1.msra.mxu0 0.0
    %140 = vmatprep.subr.mxu0 0.0
    %141 = vmatpush1.msra.mxu0 0.0
    %142 = vmatprep.subr.mxu0 0.0
    %143 = vmatpush1.msra.mxu0 0.0
    %144 = vmatprep.subr.mxu0 0.0
    %145 = vmatpush1.msra.mxu0 0.0
    %146 = vmatprep.subr.mxu0 0.0
    %147 = vmatpush1.msra.mxu0 %v118
    %148 = vmatprep.subr.mxu0 0.0
    %149 = vmatpush1.msra.mxu0 %v117
    %150 = vmatprep.subr.mxu0 0.0
    %151 = vmatpush1.msra.mxu0 %v116
    %152 = vmatprep.subr.mxu0 0.0
    %153 = vmatpush1.msra.mxu0 %v115
    %154 = vmatprep.subr.mxu0 0.0
    %155 = vmatpush1.msra.mxu0 %v114
    %156 = vmatprep.subr.mxu0 0.0
    %157 = vmatpush1.msra.mxu0 %v113
    %158 = vmatprep.subr.mxu0 0.0
    %159 = vmatpush1.msra.mxu0 %v112
    %160 = vmatprep.subr.mxu0 0.0
    %161 = vmatpush1.msra.mxu0 %v111
    %162 = vmatprep.subr.mxu0 0.0
    %163 = vmatpush2.msra.mxu0 0.0
    %164 = vmatprep.subr.mxu0 0.0
    %165 = vmatpush2.msra.mxu0 0.0
    %166 = vmatprep.subr.mxu0 0.0
    %167 = vmatpush2.msra.mxu0 0.0
    %168 = vmatprep.subr.mxu0 0.0
    %169 = vmatpush2.msra.mxu0 0.0
    %170 = vmatprep.subr.mxu0 0.0
    %171 = vmatpush2.msra.mxu0 0.0
    %172 = vmatprep.subr.mxu0 0.0
    %173 = vmatpush2.msra.mxu0 0.0
    %174 = vmatprep.subr.mxu0 0.0
    %175 = vmatpush2.msra.mxu0 0.0
    %176 = vmatprep.subr.mxu0 0.0
    %177 = vmatpush2.msra.mxu0 0.0
    %178 = vmatprep.subr.mxu0 0.0
    %179 = vmatpush2.msra.mxu0 0.0
    %180 = vmatprep.subr.mxu0 0.0
    %181 = vmatpush2.msra.mxu0 0.0
    %182 = vmatprep.subr.mxu0 0.0
    %183 = vmatpush2.msra.mxu0 0.0
    %184 = vmatprep.subr.mxu0 0.0
    %185 = vmatpush2.msra.mxu0 0.0
    %186 = vmatprep.subr.mxu0 0.0
    %187 = vmatpush2.msra.mxu0 0.0
    %188 = vmatprep.subr.mxu0 0.0
    %189 = vmatpush2.msra.mxu0 0.0
    %190 = vmatprep.subr.mxu0 0.0
    %191 = vmatpush2.msra.mxu0 0.0
    %192 = vmatprep.subr.mxu0 0.0
    %193 = vmatpush2.msra.mxu0 0.0
    %194 = vmatprep.mubr.f32.mxu0 0.0
    %195 = vmatmul.mubr.f32.gmra.mxu0 %v128
    %v196 = vpop.f32.mrf.mxu0
    %v197 = vadd.f32 %v124, %v196
    %v198 = vpop.f32.mrf.mxu0
    %199 = vdwg.mxu0
    %v200 = vmax.f32 %v197, 0.0
    %v201 = vld [vmem:[%s5] sm:$0xff]
    %v202 = vld [vmem:[%s5 + $0x8] sm:$0xff]
    %v203 = vld [vmem:[%s5 + $0x10] sm:$0xff]
    %v204 = vld [vmem:[%s5 + $0x18] sm:$0xff]
    %v205 = vld [vmem:[%s5 + $0x20] sm:$0xff]
    %v206 = vld [vmem:[%s5 + $0x28] sm:$0xff]
    %v207 = vld [vmem:[%s5 + $0x30] sm:$0xff]
    %v208 = vld [vmem:[%s5 + $0x38] sm:$0xff]
    %v209 = vld [vmem:[%s5 + $0x40] sm:$0xff]
    %v210 = vld [vmem:[%s5 + $0x48] sm:$0xff]
    %v211 = vld [vmem:[%s5 + $0x50] sm:$0xff]
    %v212 = vld [vmem:[%s5 + $0x58] sm:$0xff]
    %v213 = vld [vmem:[%s5 + $0x60] sm:$0xff]
    %v214 = vld [vmem:[%s5 + $0x68] sm:$0xff]
    %v215 = vld [vmem:[%s5 + $0x70] sm:$0xff]
    %v216 = vld [vmem:[%s5 + $0x78] sm:$0xff]
    %v217 = vld [vmem:[%s6] sm:$0x1]
    %v219 = vlaneseq
    %v220 = vshrl.u32 %v219, 7
    %v221 = vsub.s32 0, %v220
    %v222 = vrot.slane %v217, %v221
    %224 = vmatprep.subr.mxu0 0.0
    %225 = vmatpush1.msra.mxu0 %v216
    %226 = vmatprep.subr.mxu0 0.0
    %227 = vmatpush1.msra.mxu0 %v215
    %228 = vmatprep.subr.mxu0 0.0
    %229 = vmatpush1.msra.mxu0 %v214
    %230 = vmatprep.subr.mxu0 0.0
    %231 = vmatpush1.msra.mxu0 %v213
    %232 = vmatprep.subr.mxu0 0.0
    %233 = vmatpush1.msra.mxu0 %v212
    %234 = vmatprep.subr.mxu0 0.0
    %235 = vmatpush1.msra.mxu0 %v211
    %236 = vmatprep.subr.mxu0 0.0
    %237 = vmatpush1.msra.mxu0 %v210
    %238 = vmatprep.subr.mxu0 0.0
    %239 = vmatpush1.msra.mxu0 %v209
    %240 = vmatprep.subr.mxu0 0.0
    %241 = vmatpush1.msra.mxu0 %v208
    %242 = vmatprep.subr.mxu0 0.0
    %243 = vmatpush1.msra.mxu0 %v207
    %244 = vmatprep.subr.mxu0 0.0
    %245 = vmatpush1.msra.mxu0 %v206
    %246 = vmatprep.subr.mxu0 0.0
    %247 = vmatpush1.msra.mxu0 %v205
    %248 = vmatprep.subr.mxu0 0.0
    %249 = vmatpush1.msra.mxu0 %v204
    %250 = vmatprep.subr.mxu0 0.0
    %251 = vmatpush1.msra.mxu0 %v203
    %252 = vmatprep.subr.mxu0 0.0
    %253 = vmatpush1.msra.mxu0 %v202
    %254 = vmatprep.subr.mxu0 0.0
    %255 = vmatpush1.msra.mxu0 %v201
    %256 = vmatprep.subr.mxu0 0.0
    %257 = vmatpush2.msra.mxu0 0.0
    %258 = vmatprep.subr.mxu0 0.0
    %259 = vmatpush2.msra.mxu0 0.0
    %260 = vmatprep.subr.mxu0 0.0
    %261 = vmatpush2.msra.mxu0 0.0
    %262 = vmatprep.subr.mxu0 0.0
    %263 = vmatpush2.msra.mxu0 0.0
    %264 = vmatprep.subr.mxu0 0.0
    %265 = vmatpush2.msra.mxu0 0.0
    %266 = vmatprep.subr.mxu0 0.0
    %267 = vmatpush2.msra.mxu0 0.0
    %268 = vmatprep.subr.mxu0 0.0
    %269 = vmatpush2.msra.mxu0 0.0
    %270 = vmatprep.subr.mxu0 0.0
    %271 = vmatpush2.msra.mxu0 0.0
    %272 = vmatprep.subr.mxu0 0.0
    %273 = vmatpush2.msra.mxu0 0.0
    %274 = vmatprep.subr.mxu0 0.0
    %275 = vmatpush2.msra.mxu0 0.0
    %276 = vmatprep.subr.mxu0 0.0
    %277 = vmatpush2.msra.mxu0 0.0
    %278 = vmatprep.subr.mxu0 0.0
    %279 = vmatpush2.msra.mxu0 0.0
    %280 = vmatprep.subr.mxu0 0.0
    %281 = vmatpush2.msra.mxu0 0.0
    %282 = vmatprep.subr.mxu0 0.0
    %283 = vmatpush2.msra.mxu0 0.0
    %284 = vmatprep.subr.mxu0 0.0
    %285 = vmatpush2.msra.mxu0 0.0
    %286 = vmatprep.subr.mxu0 0.0
    %287 = vmatpush2.msra.mxu0 0.0
    %288 = vmatprep.mubr.f32.mxu0 0.0
    %289 = vmatmul.mubr.f32.gmra.mxu0 %v200
    %v290 = vpop.f32.mrf.mxu0
    %v291 = vadd.f32 %v222, %v290
    %v292 = vpop.f32.mrf.mxu0
    %293 = vdwg.mxu0
    %295 = vset.pattern.permute.xlu0 4
    %296 = vperm.xlu0 %295, %v291
    %v297 = vpop.permute.xlu0 %296
    %v299 = vadd.f32 %v297, %v291
    %vm300 = vcmask 31744
    %v301 = vsel %vm300, %v291, 0.0
    %302 = vadd.xlane.f32.xlu0 %v301
    %v303 = vpop.xlane.xlu0 %302
    %v304 = vsel %vm300, %v299, %v303
    %vm305 = vcmask 39936
    %306 = vst.msk [vmem:[#allocation2] sm:$0xff] %vm305, %v304
    // Predicated region
    $region30: #{tpu_custom_call.1} parent=1 // pred_check
      _
    $region31: #{tpu_custom_call.1} parent=1 // pred_check_branch
      %308 = sbr.rel (0) target = $region33
    $region32: #{tpu_custom_call.1} parent=1 // pred_region
      %s310 = ssub.s32 128, 128
      %311 = vsyncadd [#allocation3], %s310
      %s313 = sshll.u32 [#allocation2], 4
      %s314 = int_to_ptr.vmem [resolvable:$true] %s313
      %316 = dma.vmem_to_hbm [thread:$0]  %s314, 128, %s7, [#allocation3]
    $region33: #{tpu_custom_call.1} parent=1 // pred_fallthru
      _
    // Predicated region
    $region34: #{tpu_custom_call.1} parent=1 // pred_check
      _
    $region35: #{tpu_custom_call.1} parent=1 // pred_check_branch
      %318 = sbr.rel (0) target = $region37
    $region36: #{tpu_custom_call.1} parent=1 // pred_region
      %319 = dma.done [#allocation3], 128
    $region37: #{tpu_custom_call.1} parent=1 // pred_fallthru
      _
    %320 = vsyncpa [#allocation3], 1

</llo_original>
